<compile_context>
chip_gen: v7x
topology: tpu7x:2x2x1
jax: 0.10.0
libtpu: 0.0.40
codegen_flags: <defaults>
</compile_context>

<pallas_src>
import jax
import jax.numpy as jnp
from jax.experimental import pallas as pl
from jax.experimental.pallas import tpu as pltpu


# Below this total size a plain XLA slice (fusable, no custom-call overhead)
# beats any standalone kernel launch.
_FAST_PATH_BYTES = 1 * 1024 * 1024
# Only bother splitting the copy across two grid steps (two TCs on v7x) when
# there are enough bytes for the split to matter.
_SPLIT_BYTES = 2 * 1024 * 1024

# Sublane packing per itemsize (alignment of the split point only; DMAs do not
# require it, it just keeps the chunk boundaries tile-friendly).
_SUBLANE = {8: 8, 4: 8, 2: 16, 1: 32}


def _round_up(a, b):
    return ((a + b - 1) // b) * b


def _compute_chunks(sl, model_dim, itemsize, num_slices):
    """Split [0, sl) rows into near-equal, sublane-aligned (start, size) chunks."""
    sub = _SUBLANE.get(itemsize, 8)
    if num_slices is None:
        total_bytes = sl * model_dim * itemsize
        num_slices = 2 if total_bytes >= _SPLIT_BYTES else 1
    num_slices = max(1, int(num_slices))

    chunks = []
    start = 0
    for i in range(num_slices):
        remaining_slices = num_slices - i
        remaining_rows = sl - start
        if remaining_rows <= 0:
            break
        size = -(-remaining_rows // remaining_slices)  # ceil div
        if remaining_slices > 1:
            size = min(_round_up(size, sub), remaining_rows)
        chunks.append((start, size))
        start += size
    return chunks


def _make_prefix_copy_kernel(chunks):
    """Kernel: direct HBM->HBM DMA(s) of the table prefix (no VMEM bounce)."""

    def _copy_chunk(emb_hbm, out_hbm, sem, start, size):
        cp = pltpu.make_async_copy(
            emb_hbm.at[pl.ds(start, size), :],
            out_hbm.at[pl.ds(start, size), :],
            sem,
        )
        cp.start()
        cp.wait()

    if len(chunks) == 1:
        ((start, size),) = chunks

        def kernel(emb_hbm, out_hbm, sem):
            _copy_chunk(emb_hbm, out_hbm, sem, start, size)

        return kernel

    def kernel(emb_hbm, out_hbm, sem):
        i = pl.program_id(0)
        for idx, (start, size) in enumerate(chunks):

            @pl.when(i == idx)
            def _(start=start, size=size):
                _copy_chunk(emb_hbm, out_hbm, sem, start, size)

    return kernel


def learned_position_embeddings_forward(x, emb_weight, *, force_pallas=False,
                                         num_slices=None):
    """JAX/Pallas equivalent of LearnedPositionEmbeddings.forward(x).

    Args:
      x: array of shape (B, S, ...) — only S = x.shape[1] is used.
      emb_weight: embedding table of shape (seq_len, model_dim).
      force_pallas: skip the zero-copy / XLA-slice fast paths (for testing).
      num_slices: optional override for the number of row chunks (grid steps).

    Returns:
      (S, model_dim) array == emb_weight[:S].
    """
    sl = x.shape[1]
    seq_len, model_dim = emb_weight.shape
    if sl > seq_len:
        raise ValueError("sequence length exceeds learned position table")

    itemsize = jnp.dtype(emb_weight.dtype).itemsize
    total_bytes = sl * model_dim * itemsize

    if not force_pallas:
        # Whole table requested: literally zero HBM traffic.
        if sl == seq_len:
            return emb_weight
        # Small copies: a contiguous-prefix slice fuses into the consumer and
        # usually never materializes; beats any standalone custom call.
        if total_bytes <= _FAST_PATH_BYTES:
            return jax.lax.slice(emb_weight, (0, 0), (sl, model_dim))

    chunks = _compute_chunks(sl, model_dim, itemsize, num_slices)
    grid = (len(chunks),)

    return pl.pallas_call(
        _make_prefix_copy_kernel(chunks),
        out_shape=jax.ShapeDtypeStruct((sl, model_dim), emb_weight.dtype),
        grid=grid,
        # Raw HBM refs: the body DMAs HBM->HBM directly, no auto tile DMA.
        in_specs=[pl.BlockSpec(memory_space=pl.ANY)],
        out_specs=pl.BlockSpec(memory_space=pl.ANY),
        scratch_shapes=[pltpu.SemaphoreType.DMA(())],
        compiler_params=pltpu.CompilerParams(
            # "parallel" lets v7x's two TensorCores each take one chunk when
            # the grid is 2-wide; harmless (sequential) on 1-TC chips.
            dimension_semantics=("parallel",) * len(grid)),
        cost_estimate=pl.CostEstimate(
            flops=0, transcendentals=0, bytes_accessed=2 * total_bytes),
    )(emb_weight)


if __name__ == "__main__":
    # Module hyper-params (small, consistent with the module's __init__).
    seq_len = 64
    model_dim = 256
    init = 0.02

    key = jax.random.PRNGKey(0)
    k_emb, k_x = jax.random.split(key, 2)

    # Deterministic synthetic parameter: emb.weight ~ N(0, init^2).
    emb_weight = (init * jax.random.normal(k_emb, (seq_len, model_dim))).astype(
        jnp.float32
    )

    # Example input: (batch=2, seq=40, model_dim). Only shape[1] matters.
    x = jax.random.normal(k_x, (2, 40, model_dim), dtype=jnp.float32)
    ref = emb_weight[: x.shape[1]]

    # 1) Pallas path, single direct HBM->HBM DMA.
    out = jax.block_until_ready(
        learned_position_embeddings_forward(x, emb_weight, force_pallas=True)
    )
    assert out.shape == (x.shape[1], model_dim)
    assert jnp.array_equal(out, ref), "single-DMA Pallas output mismatch"

    # 2) Pallas path, 2-chunk split (exercises the multi-step parallel grid
    #    used for v7x's two TensorCores; ragged second chunk: 24 + 16 rows).
    out_split = jax.block_until_ready(
        learned_position_embeddings_forward(
            x, emb_weight, force_pallas=True, num_slices=2
        )
    )
    assert jnp.array_equal(out_split, ref), "split-DMA Pallas output mismatch"

    # 3) Small-copy fast path (plain XLA slice).
    out_fast = jax.block_until_ready(
        learned_position_embeddings_forward(x, emb_weight)
    )
    assert jnp.array_equal(out_fast, ref), "fast-path mismatch"

    # 4) Whole-table fast path (sl == seq_len -> zero-copy return).
    x_full = jnp.zeros((2, seq_len, model_dim), dtype=jnp.float32)
    out_full = jax.block_until_ready(
        learned_position_embeddings_forward(x_full, emb_weight)
    )
    assert jnp.array_equal(out_full, emb_weight), "full-table path mismatch"

    print("KERNEL_OK")
</pallas_src>

<mosaic_0001>
module attributes {stable_mosaic.version = 11 : i64} {
  func.func @kernel(%arg0: i32, %arg1: memref<64x256xf32, #tpu.memory_space<any>>, %arg2: memref<40x256xf32, #tpu.memory_space<any>>, %arg3: memref<!tpu.dma_semaphore, #tpu.memory_space<semaphore_mem>>) attributes {dimension_semantics = [#tpu.dimension_semantics<parallel>], iteration_bounds = array<i64: 1>, scalar_prefetch = 0 : i64, scratch_operands = 1 : i64, tpu.core_type = #tpu.core_type<tc>, window_params = [{}, {}]} {
    %c0_i32 = arith.constant 0 : i32
    %c0_i32_0 = arith.constant 0 : i32
    %0 = tpu.memref_slice %arg1[%c0_i32, %c0_i32_0] : memref<64x256xf32, #tpu.memory_space<any>> -> memref<40x256xf32, #tpu.memory_space<any>>
    %c0_i32_1 = arith.constant 0 : i32
    %c0_i32_2 = arith.constant 0 : i32
    %1 = tpu.memref_slice %arg2[%c0_i32_1, %c0_i32_2] : memref<40x256xf32, #tpu.memory_space<any>> -> memref<40x256xf32, #tpu.memory_space<any>>
    tpu.enqueue_dma source(%0 : memref<40x256xf32, #tpu.memory_space<any>>) target(%1 : memref<40x256xf32, #tpu.memory_space<any>>) target_semaphore(%arg3 : memref<!tpu.dma_semaphore, #tpu.memory_space<semaphore_mem>>)
    %c0_i32_3 = arith.constant 0 : i32
    %c0_i32_4 = arith.constant 0 : i32
    %2 = tpu.memref_slice %arg1[%c0_i32_3, %c0_i32_4] : memref<64x256xf32, #tpu.memory_space<any>> -> memref<40x256xf32, #tpu.memory_space<any>>
    %c0_i32_5 = arith.constant 0 : i32
    %c0_i32_6 = arith.constant 0 : i32
    %3 = tpu.memref_slice %arg2[%c0_i32_5, %c0_i32_6] : memref<40x256xf32, #tpu.memory_space<any>> -> memref<40x256xf32, #tpu.memory_space<any>>
    tpu.wait_dma2 semaphore(%arg3 : memref<!tpu.dma_semaphore, #tpu.memory_space<semaphore_mem>>) src(%2 : memref<40x256xf32, #tpu.memory_space<any>>) dst(%3 : memref<40x256xf32, #tpu.memory_space<any>>)
    return
  }
}

</mosaic_0001>

<llo_original>
// kernel: tpu_custom_call.1
$region0: #{tpu_custom_call.1}
  #allocation0 [shape = 'u32[]', space=smem, size = 0x4, offset = 0x4, fixed_abs, tag = 'smem constant byte address 0x4 - core index']
  #allocation1 [shape = 'u32[144,128]{1,0:T(1,128)}', space=vmem, size = 0x12000, scoped, tag = 'internal scratch']
  #allocation2 [shape = 's32[1]{0}', space=sflag, size = 0x4, scoped, tag = 'scratch operand']
  #allocation3 [shape = 's32[]', space=sflag, size = 0x4, offset = 0, fixed_abs, tag = 'sflag constant byte address 0x0 - dummy sync flag']
  #allocation4 [shape = 'u32[0]{0}', space=smem, size = 0, offset = 0, fixed_abs, tag = 'smem constant byte address 0x0 - null']
  %s0 = inlined_call_operand.hbm [shape: f32[64,256], index: 0, kind: input, shape index: {}]
  %s1 = inlined_call_operand.hbm [shape: f32[40,256], index: 1, kind: output, shape index: {}]
  %s2 = sld [smem:[#allocation0]]
  $region2: #{tpu_custom_call.1} parent=0
    _
  %s4 = ssub.s32 1, %s2
  %s5 = scalar_select 0, %s4, %s2
  %s7 = sshll.u32 1, 14
  %s8 = sxor.u32 4294967295, %s7
  %s11 = sshll.u32 3, 24
  %s12 = sxor.u32 4294967295, %s11
  %s13 = sand.u32 0, %s12
  %s15 = sor.u32 %s13, 0
  %18 = dma.general %s0, 1280, %s1, [#allocation2], [#allocation3], [#allocation4], %s15, 0
  %s19 = smul.u32 8, 5
  %s20 = smul.u32 %s19, 2
  %s21 = sshll.u32 %s20, 4
  %22 = dma.done [#allocation2], %s21
  %23 = vsyncmov [#allocation2]
  %s24 = vpop.sfrf %23
  %p25 = scmp.eq.s32.totalorder %s24, 0
  %p26 = pneg %p25
  %28 = shalt.err (%p26)

</llo_original>
